<compile_context>
chip_gen: v5e
topology: v5e:2x2
jax: 0.10.0
libtpu: 0.0.40
codegen_flags: <defaults>
</compile_context>

<pallas_src>
import functools

import jax
import jax.numpy as jnp
from jax.experimental import pallas as pl
from jax.experimental.pallas import tpu as pltpu


# ---------------------------------------------------------------------------
# Tile-width selection: lane-aligned, driven by a per-step byte target so DMAs
# are large enough to amortize the ~0.35 us per-grid-step overhead.
# ---------------------------------------------------------------------------
def _tile_width(B, D, itemsize):
    b_pad = ((B + 7) // 8) * 8                 # sublane-padded rows in VMEM
    target = 2 * 1024 * 1024                   # ~2 MiB per buffered input tile
    t = (target // (b_pad * itemsize)) // 128 * 128
    d128 = ((D + 127) // 128) * 128
    t = max(128, min(t, d128, 65536))
    return int(t)


# ---------------------------------------------------------------------------
# Shared tile body: mask the tail, center per-column (column means are local
# to each (B, tile) block), and compute the partial Gram  Xc @ Xc^T.
# ---------------------------------------------------------------------------
def _gram_from_tile(x, k, *, d_total, tile, n_tiles):
    rem = d_total % tile
    if rem != 0:   # static (Python-level) branch
        # Boundary block: columns >= `valid` are outside the array and hold
        # unspecified data; zero them.  Zero columns have zero column mean and
        # contribute exactly zero to the centered Gram.
        valid = jnp.where(k == n_tiles - 1, rem, tile)
        lane = jax.lax.broadcasted_iota(jnp.int32, x.shape, 1)
        x = jnp.where(lane < valid, x, jnp.zeros_like(x))

    xf = x.astype(jnp.float32)
    xc = xf - jnp.mean(xf, axis=0, keepdims=True)
    if x.dtype == jnp.bfloat16:
        # Feed the MXU in bf16 (native rate, half the VMEM temp); acc is f32.
        xc = xc.astype(jnp.bfloat16)
    return jax.lax.dot_general(
        xc, xc,
        dimension_numbers=(((1,), (1,)), ((), ())),   # contract over the D-tile
        preferred_element_type=jnp.float32)


# ---------------------------------------------------------------------------
# Kernel A (fast path, equal shapes): both Grams in one call.
#   grid = (2, n_tiles); axis 0 = which input ("parallel"), axis 1 = reduction.
#   x1_ref / x2_ref : (B, t) tiles; the inactive one is parked on block 0.
#   o_ref           : (1, B, B) f32 accumulator for the current input's Gram.
# ---------------------------------------------------------------------------
def _pair_gram_kernel(x1_ref, x2_ref, o_ref, *, d_total, tile, n_tiles):
    s = pl.program_id(0)
    k = pl.program_id(1)

    @pl.when(k == 0)
    def _init():
        o_ref[...] = jnp.zeros_like(o_ref)

    # Only one tile is live this step; the other ref is parked on block 0 by
    # its index_map, so the select costs a VMEM read, not HBM traffic.
    x = jnp.where(s == 0, x1_ref[...], x2_ref[...])
    gram = _gram_from_tile(x, k, d_total=d_total, tile=tile, n_tiles=n_tiles)
    o_ref[...] += gram[None]


def _pair_grams(x1, x2):
    """x1, x2: (B, D), same shape & dtype -> (2, B, B) f32 centered Grams."""
    B, D = x1.shape
    t = _tile_width(B, D, jnp.dtype(x1.dtype).itemsize)
    n_tiles = int(pl.cdiv(D, t))
    kernel = functools.partial(_pair_gram_kernel,
                               d_total=D, tile=t, n_tiles=n_tiles)
    return pl.pallas_call(
        kernel,
        out_shape=jax.ShapeDtypeStruct((2, B, B), jnp.float32),
        grid=(2, n_tiles),
        in_specs=[
            pl.BlockSpec((B, t), lambda s, k: (0, k * (1 - s))),  # live when s==0
            pl.BlockSpec((B, t), lambda s, k: (0, k * s)),        # live when s==1
        ],
        out_specs=pl.BlockSpec((1, B, B), lambda s, k: (s, 0, 0)),
        compiler_params=pltpu.CompilerParams(
            dimension_semantics=("parallel", "arbitrary"),
            vmem_limit_bytes=32 * 1024 * 1024),
    )(x1, x2)


# ---------------------------------------------------------------------------
# Kernel B (fallback, different feature sizes / dtypes): one Gram per call.
# ---------------------------------------------------------------------------
def _single_gram_kernel(x_ref, o_ref, *, d_total, tile, n_tiles):
    k = pl.program_id(0)

    @pl.when(k == 0)
    def _init():
        o_ref[...] = jnp.zeros_like(o_ref)

    gram = _gram_from_tile(x_ref[...], k,
                           d_total=d_total, tile=tile, n_tiles=n_tiles)
    o_ref[...] += gram


def _single_gram(x):
    """x: (B, D) -> (B, B) f32 centered Gram."""
    B, D = x.shape
    t = _tile_width(B, D, jnp.dtype(x.dtype).itemsize)
    n_tiles = int(pl.cdiv(D, t))
    kernel = functools.partial(_single_gram_kernel,
                               d_total=D, tile=t, n_tiles=n_tiles)
    return pl.pallas_call(
        kernel,
        out_shape=jax.ShapeDtypeStruct((B, B), jnp.float32),
        grid=(n_tiles,),
        in_specs=[pl.BlockSpec((B, t), lambda k: (0, k))],
        out_specs=pl.BlockSpec((B, B), lambda k: (0, 0)),
        compiler_params=pltpu.CompilerParams(
            dimension_semantics=("arbitrary",),
            vmem_limit_bytes=32 * 1024 * 1024),
    )(x)


# ---------------------------------------------------------------------------
# Forward pass.
# ---------------------------------------------------------------------------
def diff_loss(input1, input2):
    B = input1.shape[0]
    # Row-major flatten == torch's .view(batch, -1) on contiguous NCHW.
    x1 = input1.reshape(B, -1)
    x2 = input2.reshape(B, -1)
    D1, D2 = x1.shape[1], x2.shape[1]

    if x1.shape == x2.shape and x1.dtype == x2.dtype:
        grams = _pair_grams(x1, x2)
        c1, c2 = grams[0], grams[1]
    else:
        c1 = _single_gram(x1)
        c2 = _single_gram(x2)

    # O(B^2) epilogue in plain JAX (tiny; avoids a third kernel launch).
    eps = 1e-6
    n1 = jnp.sqrt(jnp.maximum(jnp.diagonal(c1), 0.0)) + eps   # row L2 norms + eps
    n2 = jnp.sqrt(jnp.maximum(jnp.diagonal(c2), 0.0)) + eps
    w = n1 * n2                                               # (B,)
    weight = 1.0 / (w[:, None] * w[None, :])                  # (B, B)
    return jnp.sum(c1 * c2 * weight) / (D1 * D2)


# ---------------------------------------------------------------------------
# Pure-JAX reference (mirror of the PyTorch forward) for a sanity check.
# ---------------------------------------------------------------------------
def diff_loss_ref(input1, input2):
    B = input1.shape[0]
    x1 = input1.reshape(B, -1).astype(jnp.float32)
    x2 = input2.reshape(B, -1).astype(jnp.float32)
    x1 = x1 - jnp.mean(x1, axis=0, keepdims=True)
    x2 = x2 - jnp.mean(x2, axis=0, keepdims=True)
    n1 = jnp.linalg.norm(x1, axis=1, keepdims=True)
    n2 = jnp.linalg.norm(x2, axis=1, keepdims=True)
    x1 = x1 / (n1 + 1e-6)
    x2 = x2 / (n2 + 1e-6)
    return jnp.mean((x1.T @ x2) ** 2)


if __name__ == "__main__":
    key = jax.random.PRNGKey(0)
    k1, k2, k3, k4 = jax.random.split(key, 4)

    # NCHW inputs, as a PyTorch caller would pass them (lane-aligned D = 1024).
    input1 = jax.random.normal(k1, (2, 4, 16, 16), dtype=jnp.float32)
    input2 = jax.random.normal(k2, (2, 4, 16, 16), dtype=jnp.float32)
    loss = jax.block_until_ready(diff_loss(input1, input2))
    ref = jax.block_until_ready(diff_loss_ref(input1, input2))
    assert jnp.allclose(loss, ref, rtol=1e-3, atol=1e-8), (loss, ref)

    # Non-lane-aligned feature size (D = 105): exercises the in-kernel tail mask.
    input3 = jax.random.normal(k3, (2, 3, 5, 7), dtype=jnp.float32)
    input4 = jax.random.normal(k4, (2, 3, 5, 7), dtype=jnp.float32)
    loss2 = jax.block_until_ready(diff_loss(input3, input4))
    ref2 = jax.block_until_ready(diff_loss_ref(input3, input4))
    assert jnp.allclose(loss2, ref2, rtol=1e-3, atol=1e-8), (loss2, ref2)

    # Different feature sizes: exercises the single-Gram fallback path.
    loss3 = jax.block_until_ready(diff_loss(input1, input4))
    ref3 = jax.block_until_ready(diff_loss_ref(input1, input4))
    assert jnp.allclose(loss3, ref3, rtol=1e-3, atol=1e-8), (loss3, ref3)

    print("KERNEL_OK")
</pallas_src>

<mosaic_0001>
module attributes {stable_mosaic.version = 11 : i64} {
  func.func @_pair_gram_kernel(%arg0: i32, %arg1: i32, %arg2: memref<2x1024xf32, #tpu.memory_space<vmem>>, %arg3: memref<2x1024xf32, #tpu.memory_space<vmem>>, %arg4: memref<1x2x2xf32, #tpu.memory_space<vmem>>) attributes {dimension_semantics = [#tpu.dimension_semantics<parallel>, #tpu.dimension_semantics<arbitrary>], iteration_bounds = array<i64: 2, 1>, scalar_prefetch = 0 : i64, scratch_operands = 0 : i64, tpu.core_type = #tpu.core_type<tc>, window_params = [{transform_indices = @transform_0, window_bounds = array<i64: 2, 1024>}, {transform_indices = @transform_1, window_bounds = array<i64: 2, 1024>}, {transform_indices = @transform_2, window_bounds = array<i64: 1, 2, 2>}]} {
    %c0_i32 = arith.constant 0 : i32
    %0 = arith.cmpi eq, %arg1, %c0_i32 : i32
    %1 = arith.extui %0 : i1 to i32
    %c0_i32_0 = arith.constant 0 : i32
    %2 = arith.cmpi ne, %1, %c0_i32_0 : i32
    scf.if %2 {
      %cst_13 = arith.constant 0.000000e+00 : f32
      %18 = vector.broadcast %cst_13 : f32 to vector<1x2x2xf32>
      %c0_14 = arith.constant 0 : index
      %c0_15 = arith.constant 0 : index
      %c0_16 = arith.constant 0 : index
      %19 = vector.load %arg4[%c0_14, %c0_15, %c0_16] : memref<1x2x2xf32, #tpu.memory_space<vmem>>, vector<1x2x2xf32>
      tpu.vector_store %arg4[%c0_14, %c0_15, %c0_16], %18 {strides = array<i32>} : memref<1x2x2xf32, #tpu.memory_space<vmem>>, vector<1x2x2xf32>,
    } else {
    }
    %c0_i32_1 = arith.constant 0 : i32
    %3 = arith.cmpi eq, %arg0, %c0_i32_1 : i32
    %c0 = arith.constant 0 : index
    %c0_2 = arith.constant 0 : index
    %4 = vector.load %arg2[%c0, %c0_2] : memref<2x1024xf32, #tpu.memory_space<vmem>>, vector<2x1024xf32>
    %c0_3 = arith.constant 0 : index
    %c0_4 = arith.constant 0 : index
    %5 = vector.load %arg3[%c0_3, %c0_4] : memref<2x1024xf32, #tpu.memory_space<vmem>>, vector<2x1024xf32>
    %6 = arith.select %3, %4, %5 : vector<2x1024xf32>
    %cst = arith.constant dense<0.000000e+00> : vector<1024xf32>
    %7 = vector.multi_reduction <add>, %6, %cst [0] : vector<2x1024xf32> to vector<1024xf32>
    %8 = vector.shape_cast %7 : vector<1024xf32> to vector<1x1024xf32>
    %cst_5 = arith.constant 2.000000e+00 : f32
    %9 = vector.broadcast %cst_5 : f32 to vector<1x1024xf32>
    %10 = arith.divf %8, %9 : vector<1x1024xf32>
    %11 = vector.broadcast %10 : vector<1x1024xf32> to vector<2x1024xf32>
    %12 = arith.subf %6, %11 : vector<2x1024xf32>
    %cst_6 = arith.constant dense<0.000000e+00> : vector<2x2xf32>
    %13 = tpu.matmul %12, %12, %cst_6 {dimension_numbers = #tpu.dot_dimension_numbers<[1], [1], [0], [0], [0, 0, 1, 0], [], []>} : vector<2x1024xf32>, vector<2x1024xf32>, vector<2x2xf32> -> vector<2x2xf32>
    %c0_7 = arith.constant 0 : index
    %c0_8 = arith.constant 0 : index
    %c0_9 = arith.constant 0 : index
    %14 = vector.load %arg4[%c0_7, %c0_8, %c0_9] : memref<1x2x2xf32, #tpu.memory_space<vmem>>, vector<1x2x2xf32>
    %15 = vector.shape_cast %13 : vector<2x2xf32> to vector<1x2x2xf32>
    %16 = arith.addf %14, %15 : vector<1x2x2xf32>
    %c0_10 = arith.constant 0 : index
    %c0_11 = arith.constant 0 : index
    %c0_12 = arith.constant 0 : index
    %17 = vector.load %arg4[%c0_10, %c0_11, %c0_12] : memref<1x2x2xf32, #tpu.memory_space<vmem>>, vector<1x2x2xf32>
    tpu.vector_store %arg4[%c0_10, %c0_11, %c0_12], %16 {strides = array<i32>} : memref<1x2x2xf32, #tpu.memory_space<vmem>>, vector<1x2x2xf32>,
    return
  }
  func.func @transform_0(%arg0: i32, %arg1: i32) -> (i32, i32) {
    %c1_i32 = arith.constant 1 : i32
    %0 = arith.subi %c1_i32, %arg0 : i32
    %1 = arith.muli %arg1, %0 : i32
    %c0_i32 = arith.constant 0 : i32
    %c0_i32_0 = arith.constant 0 : i32
    return %c0_i32, %1 : i32, i32
  }
  func.func @transform_1(%arg0: i32, %arg1: i32) -> (i32, i32) {
    %0 = arith.muli %arg1, %arg0 : i32
    %c0_i32 = arith.constant 0 : i32
    %c0_i32_0 = arith.constant 0 : i32
    return %c0_i32, %0 : i32, i32
  }
  func.func @transform_2(%arg0: i32, %arg1: i32) -> (i32, i32, i32) {
    %c0_i32 = arith.constant 0 : i32
    %c0_i32_0 = arith.constant 0 : i32
    %c0_i32_1 = arith.constant 0 : i32
    return %arg0, %c0_i32, %c0_i32_0 : i32, i32, i32
  }
}

</mosaic_0001>

<llo_original>
// kernel: tpu_custom_call.1
$region0: #{tpu_custom_call.1}
  #allocation0 [shape = 'u32[]', space=smem, size = 0x4, offset = 0x4, fixed_abs, tag = 'smem constant byte address 0x4 - core index']
  #allocation1 [shape = 'u32[72,128]{1,0:T(1,128)}', space=vmem, size = 0x9000, scoped, tag = 'internal scratch']
  %s0 = inlined_call_operand.hbm [shape: f32[2,1024], index: 0, kind: input, shape index: {}]
  %s1 = inlined_call_operand.hbm [shape: f32[2,1024], index: 1, kind: input, shape index: {}]
  %s2 = inlined_call_operand.hbm [shape: f32[2,2,2], index: 2, kind: output, shape index: {}]
  %s3 = sld [smem:[#allocation0]]
  $region53: #{tpu_custom_call.1} parent=0
    _
  %s5 = ssub.s32 1, %s3
  %s6 = scalar_select 0, %s5, %s3
  $region1: #{tpu_custom_call.1} parent=0
    #allocation2 [shape = 'u8[16384]{0}', space=vmem, size = 0x4000, scoped, tag = 'input window, operand 0']
    #allocation3 [shape = 's32[2]{0}', space=sflag, size = 0x8, scoped, tag = 'scoped memory for tpu_custom_call.1']
    #allocation4 [shape = 's32[2]{0}', space=sflag, size = 0x8, scoped, tag = 'scoped memory for tpu_custom_call.1']
    #allocation5 [shape = 'u8[16384]{0}', space=vmem, size = 0x4000, scoped, tag = 'input window, operand 1']
    #allocation6 [shape = 's32[2]{0}', space=sflag, size = 0x8, scoped, tag = 'scoped memory for tpu_custom_call.1']
    #allocation7 [shape = 'u8[2048]{0}', space=vmem, size = 0x800, scoped, tag = 'output window, operand 0']
    %7 = vsyncpa [#allocation3], 0
    %s8 = scalar_lea.sflag [#allocation3], 1
    %9 = vsyncpa %s8, 0
    %10 = vsyncpa [#allocation6], 0
    %s11 = scalar_lea.sflag [#allocation6], 1
    %12 = vsyncpa %s11, 0
    %13 = vsyncpa [#allocation4], 0
    %s14 = scalar_lea.sflag [#allocation4], 1
    %15 = vsyncpa %s14, 0
    loop: start=0, step=1, limit=4
    $region2: #{tpu_custom_call.1} parent=1 // loop_pre_header
      _
    $region3: #{tpu_custom_call.1} parent=1 // loop_header
      %s17 = sphi 0, %s21
      %p18 = scmp.ge.s32.totalorder %s17, 4
      %s24 = sphi 0, %s36
      %s25 = sphi 0, %s32
      %s26 = sphi 0, %s24
      %s27 = sphi 0, %s25
      %s28 = sphi 0, %s26
      %s29 = sphi 0, %s27
      %s43 = sphi 0, %s45
      %s46 = sphi 0, %s43
      %s47 = sphi 0, %s46
      %s63 = sphi 0, %s47
      %s71 = sphi 0, %s73
      %s74 = sphi 0, %s71
      %s75 = sphi 0, %s74
      %s91 = sphi 0, %s75
      %s97 = sphi 0, %s99
      %s100 = sphi 0, %s97
      %s101 = sphi 0, %s100
      %s117 = sphi 0, %s101
    $region4: #{tpu_custom_call.1} parent=1 // loop_header_branch
      %20 = sbr.rel (%p18) target = $region8
    $region5: #{tpu_custom_call.1} parent=1 // loop_body
      %s22 = ssub.s32 %s17, 1
      %s23 = ssub.s32 %s17, 2
      %s30 = sadd.s32 1, %s25
      %p31 = scmp.ge.s32.totalorder %s30, 1
      %s32 = scalar_select %p31, 0, %s30
      %s33 = sadd.s32 1, %s24
      %s34 = scalar_select %p31, %s33, %s24
      %p35 = scmp.ge.s32.totalorder %s34, 2
      %s36 = scalar_select %p35, 0, %s34
      %s37 = ssub.s32 1, %s24
      %s38 = smul.u32 %s25, %s37
      %s39 = ssub.s32 1, %s36
      %s40 = smul.u32 %s32, %s39
      %s41 = ssub.s32 %s38, %s40
      %p42 = scmp.eq.s32.totalorder %s41, 0
      %s44 = sadd.s32 %s43, 1
      %s45 = scalar_select %p42, %s43, %s44
      %p48 = pneg %p42
      %p49 = scmp.eq.s32.totalorder %s17, 1
      %p50 = por %p48, %p49
      %p51 = scmp.ne.s32.totalorder %s43, %s46
      %p52 = scmp.eq.s32.totalorder %s17, 0
      %p53 = por %p51, %p52
      %p54 = scmp.ne.s32.totalorder %s43, %s46
      %p55 = scmp.eq.s32.totalorder %s22, 1
      %p56 = por %p54, %p55
      %p57 = scmp.ne.s32.totalorder %s46, %s47
      %p58 = scmp.eq.s32.totalorder %s22, 0
      %p59 = por %p57, %p58
      %p60 = scmp.ne.s32.totalorder %s46, %s47
      %p61 = scmp.eq.s32.totalorder %s23, 1
      %p62 = por %p60, %p61
      %p64 = scmp.ne.s32.totalorder %s47, %s63
      %p65 = scmp.eq.s32.totalorder %s23, 0
      %p66 = por %p64, %p65
      %s67 = smul.u32 %s25, %s24
      %s68 = smul.u32 %s32, %s36
      %s69 = ssub.s32 %s67, %s68
      %p70 = scmp.eq.s32.totalorder %s69, 0
      %s72 = sadd.s32 %s71, 1
      %s73 = scalar_select %p70, %s71, %s72
      %p76 = pneg %p70
      %p77 = scmp.eq.s32.totalorder %s17, 1
      %p78 = por %p76, %p77
      %p79 = scmp.ne.s32.totalorder %s71, %s74
      %p80 = scmp.eq.s32.totalorder %s17, 0
      %p81 = por %p79, %p80
      %p82 = scmp.ne.s32.totalorder %s71, %s74
      %p83 = scmp.eq.s32.totalorder %s22, 1
      %p84 = por %p82, %p83
      %p85 = scmp.ne.s32.totalorder %s74, %s75
      %p86 = scmp.eq.s32.totalorder %s22, 0
      %p87 = por %p85, %p86
      %p88 = scmp.ne.s32.totalorder %s74, %s75
      %p89 = scmp.eq.s32.totalorder %s23, 1
      %p90 = por %p88, %p89
      %p92 = scmp.ne.s32.totalorder %s75, %s91
      %p93 = scmp.eq.s32.totalorder %s23, 0
      %p94 = por %p92, %p93
      %s95 = ssub.s32 %s24, %s36
      %p96 = scmp.eq.s32.totalorder %s95, 0
      %s98 = sadd.s32 %s97, 1
      %s99 = scalar_select %p96, %s97, %s98
      %p102 = pneg %p96
      %p103 = scmp.eq.s32.totalorder %s17, 1
      %p104 = por %p102, %p103
      %p105 = scmp.ne.s32.totalorder %s97, %s100
      %p106 = scmp.eq.s32.totalorder %s17, 0
      %p107 = por %p105, %p106
      %p108 = scmp.ne.s32.totalorder %s97, %s100
      %p109 = scmp.eq.s32.totalorder %s22, 1
      %p110 = por %p108, %p109
      %p111 = scmp.ne.s32.totalorder %s100, %s101
      %p112 = scmp.eq.s32.totalorder %s22, 0
      %p113 = por %p111, %p112
      %p114 = scmp.ne.s32.totalorder %s100, %s101
      %p115 = scmp.eq.s32.totalorder %s23, 1
      %p116 = por %p114, %p115
      %p118 = scmp.ne.s32.totalorder %s101, %s117
      %p119 = scmp.eq.s32.totalorder %s23, 0
      %p120 = por %p118, %p119
      %p121 = scmp.le.s32.totalorder 1, %s17
      %p122 = scmp.lt.s32.totalorder %s17, 3
      %p123 = pnand %p121, %p122
      %p124 = pneg %p123
      // Predicated region
      $region9: #{tpu_custom_call.1} parent=5 // pred_check
        _
      $region10: #{tpu_custom_call.1} parent=5 // pred_check_branch
        %126 = sbr.rel (%p123) target = $region12
      $region11: #{tpu_custom_call.1} parent=5 // pred_region
        %s127 = ssub.s32 %s17, 1
      $region12: #{tpu_custom_call.1} parent=5 // pred_fallthru
        _
      %p128 = scmp.lt.s32.totalorder %s17, 2
      // Predicated region
      $region13: #{tpu_custom_call.1} parent=5 // pred_check
        %p129 = pneg %p128
      $region14: #{tpu_custom_call.1} parent=5 // pred_check_branch
        %131 = sbr.rel (%p129) target = $region16
      $region15: #{tpu_custom_call.1} parent=5 // pred_region
        // Predicated region
        $region17: #{tpu_custom_call.1} parent=15 // pred_check
          %p132 = pneg %p53
        $region18: #{tpu_custom_call.1} parent=15 // pred_check_branch
          %134 = sbr.rel (%p132) target = $region20
        $region19: #{tpu_custom_call.1} parent=15 // pred_region
          %s135 = sand.u32 %s43, 1
          %s136 = scalar_lea.sflag [#allocation3], %s135
          %s137 = sand.u32 %s43, 1
          %s138 = smul.addr %s137, 16
          %s139 = scalar_lea.vmem [#allocation2], %s138
          %s140 = ssub.s32 1, %s24
          %s141 = smul.u32 %s25, %s140
          %s142 = smul.u32 8, %s141
          %144 = vsyncadd %s136, 0
          %s145 = smul.addr %s142, 2
          %s146 = scalar_lea.hbm %s0, %s145
          %s148 = sshll.u32 %s146, 4
          %s149 = int_to_ptr.hbm [resolvable:$true] %s148
          %s150 = sshll.u32 %s139, 4
          %s151 = int_to_ptr.vmem [resolvable:$true] %s150
          %153 = dma.hbm_to_vmem [thread:$0]  %s149, 256, %s151, %s136
        $region20: #{tpu_custom_call.1} parent=15 // pred_fallthru
          _
        // Predicated region
        $region21: #{tpu_custom_call.1} parent=15 // pred_check
          %p154 = pneg %p81
        $region22: #{tpu_custom_call.1} parent=15 // pred_check_branch
          %156 = sbr.rel (%p154) target = $region24
        $region23: #{tpu_custom_call.1} parent=15 // pred_region
          %s157 = sand.u32 %s71, 1
          %s158 = scalar_lea.sflag [#allocation6], %s157
          %s159 = sand.u32 %s71, 1
          %s160 = smul.addr %s159, 16
          %s161 = scalar_lea.vmem [#allocation5], %s160
          %s162 = smul.u32 %s25, %s24
          %s163 = smul.u32 8, %s162
          %165 = vsyncadd %s158, 0
          %s166 = smul.addr %s163, 2
          %s167 = scalar_lea.hbm %s1, %s166
          %s169 = sshll.u32 %s167, 4
          %s170 = int_to_ptr.hbm [resolvable:$true] %s169
          %s171 = sshll.u32 %s161, 4
          %s172 = int_to_ptr.vmem [resolvable:$true] %s171
          %174 = dma.hbm_to_vmem [thread:$0]  %s170, 256, %s172, %s158
        $region24: #{tpu_custom_call.1} parent=15 // pred_fallthru
          _
      $region16: #{tpu_custom_call.1} parent=5 // pred_fallthru
        _
      %p175 = scmp.le.s32.totalorder 1, %s17
      %p176 = scmp.lt.s32.totalorder %s17, 3
      %p177 = pnand %p175, %p176
      %p178 = pneg %p177
      // Predicated region
      $region25: #{tpu_custom_call.1} parent=5 // pred_check
        _
      $region26: #{tpu_custom_call.1} parent=5 // pred_check_branch
        %180 = sbr.rel (%p177) target = $region28
      $region27: #{tpu_custom_call.1} parent=5 // pred_region
        %s181 = ssub.s32 %s17, 1
        %s182 = sand.u32 %s46, 1
        %s183 = scalar_lea.sflag [#allocation3], %s182
        %s184 = sand.u32 %s46, 1
        %s185 = smul.addr %s184, 16
        %s186 = scalar_lea.vmem [#allocation2], %s185
        // Predicated region
        $region29: #{tpu_custom_call.1} parent=27 // pred_check
          %p187 = pneg %p59
        $region30: #{tpu_custom_call.1} parent=27 // pred_check_branch
          %189 = sbr.rel (%p187) target = $region32
        $region31: #{tpu_custom_call.1} parent=27 // pred_region
          %191 = dma.done %s183, 256
        $region32: #{tpu_custom_call.1} parent=27 // pred_fallthru
          _
        %s192 = sand.u32 %s74, 1
        %s193 = scalar_lea.sflag [#allocation6], %s192
        %s194 = sand.u32 %s74, 1
        %s195 = smul.addr %s194, 16
        %s196 = scalar_lea.vmem [#allocation5], %s195
        // Predicated region
        $region33: #{tpu_custom_call.1} parent=27 // pred_check
          %p197 = pneg %p87
        $region34: #{tpu_custom_call.1} parent=27 // pred_check_branch
          %199 = sbr.rel (%p197) target = $region36
        $region35: #{tpu_custom_call.1} parent=27 // pred_region
          %201 = dma.done %s193, 256
        $region36: #{tpu_custom_call.1} parent=27 // pred_fallthru
          _
        %s202 = sand.u32 %s46, 1
        %s203 = scalar_lea.sflag [#allocation3], %s202
        %s204 = sand.u32 %s46, 1
        %s205 = smul.addr %s204, 16
        %s206 = scalar_lea.vmem [#allocation2], %s205
        %p207 = pneg %p59
        %p208 = pneg %p56
        %s209 = sand.u32 %s74, 1
        %s210 = scalar_lea.sflag [#allocation6], %s209
        %s211 = sand.u32 %s74, 1
        %s212 = smul.addr %s211, 16
        %s213 = scalar_lea.vmem [#allocation5], %s212
        %p214 = pneg %p87
        %p215 = pneg %p84
        %p216 = pneg %p113
        %p217 = pneg %p110
        %s218 = sand.u32 %s100, 1
        %s219 = scalar_lea.sflag [#allocation4], %s218
        %s220 = sand.u32 %s100, 1
        %s221 = smul.addr %s220, 2
        %s222 = scalar_lea.vmem [#allocation7], %s221
        %s223 = ssub.s32 1, %s26
        %s224 = smul.u32 %s27, %s223
        %s225 = smul.u32 8, %s224
        %s226 = smul.u32 %s27, %s26
        %s227 = smul.u32 8, %s226
        %p228 = scmp.eq.s32.totalorder %s27, 0
        // Predicated region
        $region37: #{tpu_custom_call.1} parent=27 // pred_check
          %p229 = pneg %p228
        $region38: #{tpu_custom_call.1} parent=27 // pred_check_branch
          %231 = sbr.rel (%p229) target = $region40
        $region39: #{tpu_custom_call.1} parent=27 // pred_region
          %vm232 = vcmask 9216
          %233 = vst.msk [vmem:[%s222] sm:$0x3] %vm232, 0.0
        $region40: #{tpu_custom_call.1} parent=27 // pred_fallthru
          _
        %p234 = scmp.eq.s32.totalorder %s26, 0
        %v235 = vld [vmem:[%s186] sm:$0xff]
        %v236 = vld [vmem:[%s186 + $0x8] sm:$0xff]
        %v237 = vld [vmem:[%s196] sm:$0xff]
        %v238 = vld [vmem:[%s196 + $0x8] sm:$0xff]
        %s239 = scalar_select %p234, 1, 0
        %v240 = vstv %s239
        %vm241 = vcmp.eq.s32.totalorder %v240, 1
        %v242 = vsel %vm241, %v235, %v237
        %v243 = vsel %vm241, %v236, %v238
        %246 = vst [vmem:[#allocation1] ss:$4 sm:$0xff] %v242
        %s247 = scalar_lea.vmem [#allocation1], 32
        %248 = vst [vmem:[%s247] ss:$4 sm:$0xff] %v243
        %v249 = vld.sshfl [vmem:[#allocation1] sm:$0xff pattern:$0x73625140]
        %v250 = vld.sshfl [vmem:[#allocation1 + $0x8] sm:$0xff pattern:$0x73625140]
        %v251 = vld.sshfl [vmem:[#allocation1 + $0x10] sm:$0xff pattern:$0x73625140]
        %v252 = vld.sshfl [vmem:[#allocation1 + $0x18] sm:$0xff pattern:$0x73625140]
        %v253 = vld.sshfl [vmem:[#allocation1 + $0x20] sm:$0xff pattern:$0x73625140]
        %v254 = vld.sshfl [vmem:[#allocation1 + $0x28] sm:$0xff pattern:$0x73625140]
        %v255 = vld.sshfl [vmem:[#allocation1 + $0x30] sm:$0xff pattern:$0x73625140]
        %v256 = vld.sshfl [vmem:[#allocation1 + $0x38] sm:$0xff pattern:$0x73625140]
        %vm265 = vcmask 1041408
        %v266 = vsel %vm265, %v249, 0.0
        %v267 = vrot.slane %v266, 4
        %v268 = vadd.f32 %v266, %v267
        %v269 = vrot.slane %v268, 2
        %v270 = vadd.f32 %v268, %v269
        %v271 = vrot.slane %v270, 1
        %v272 = vadd.f32 %v270, %v271
        %v273 = vsel %vm265, %v250, 0.0
        %v274 = vrot.slane %v273, 4
        %v275 = vadd.f32 %v273, %v274
        %v276 = vrot.slane %v275, 2
        %v277 = vadd.f32 %v275, %v276
        %v278 = vrot.slane %v277, 1
        %v279 = vadd.f32 %v277, %v278
        %v280 = vsel %vm265, %v251, 0.0
        %v281 = vrot.slane %v280, 4
        %v282 = vadd.f32 %v280, %v281
        %v283 = vrot.slane %v282, 2
        %v284 = vadd.f32 %v282, %v283
        %v285 = vrot.slane %v284, 1
        %v286 = vadd.f32 %v284, %v285
        %v287 = vsel %vm265, %v252, 0.0
        %v288 = vrot.slane %v287, 4
        %v289 = vadd.f32 %v287, %v288
        %v290 = vrot.slane %v289, 2
        %v291 = vadd.f32 %v289, %v290
        %v292 = vrot.slane %v291, 1
        %v293 = vadd.f32 %v291, %v292
        %v294 = vsel %vm265, %v253, 0.0
        %v295 = vrot.slane %v294, 4
        %v296 = vadd.f32 %v294, %v295
        %v297 = vrot.slane %v296, 2
        %v298 = vadd.f32 %v296, %v297
        %v299 = vrot.slane %v298, 1
        %v300 = vadd.f32 %v298, %v299
        %v301 = vsel %vm265, %v254, 0.0
        %v302 = vrot.slane %v301, 4
        %v303 = vadd.f32 %v301, %v302
        %v304 = vrot.slane %v303, 2
        %v305 = vadd.f32 %v303, %v304
        %v306 = vrot.slane %v305, 1
        %v307 = vadd.f32 %v305, %v306
        %v308 = vsel %vm265, %v255, 0.0
        %v309 = vrot.slane %v308, 4
        %v310 = vadd.f32 %v308, %v309
        %v311 = vrot.slane %v310, 2
        %v312 = vadd.f32 %v310, %v311
        %v313 = vrot.slane %v312, 1
        %v314 = vadd.f32 %v312, %v313
        %v315 = vsel %vm265, %v256, 0.0
        %v316 = vrot.slane %v315, 4
        %v317 = vadd.f32 %v315, %v316
        %v318 = vrot.slane %v317, 2
        %v319 = vadd.f32 %v317, %v318
        %v320 = vrot.slane %v319, 1
        %v321 = vadd.f32 %v319, %v320
        %v322 = vrcp.pop 2.0
        %v323 = vmul.f32 2.0, %v322
        %v324 = vsub.f32 1.0, %v323
        %v325 = vmul.f32 %v322, %v324
        %v326 = vadd.f32 %v322, %v325
        %vm327 = vweird.f32 %v322
        %v328 = vsel %vm327, %v322, %v326
        %v329 = vmul.f32 %v272, %v328
        %v330 = vmul.f32 %v279, %v328
        %v331 = vmul.f32 %v286, %v328
        %v332 = vmul.f32 %v293, %v328
        %v333 = vmul.f32 %v300, %v328
        %v334 = vmul.f32 %v307, %v328
        %v335 = vmul.f32 %v314, %v328
        %v336 = vmul.f32 %v321, %v328
        %v345 = vrot.slane %v330, 6
        %v346 = vrot.slane %v331, 4
        %v347 = vrot.slane %v332, 2
        %v348 = vrot.slane %v334, 6
        %v349 = vrot.slane %v335, 4
        %v350 = vrot.slane %v336, 2
        %v351 = vsel %vm265, %v329, %v345
        %vm352 = vcmask 1045508
        %v353 = vsel %vm352, %v346, %v347
        %vm354 = vcmask 1043456
        %v355 = vsel %vm354, %v351, %v353
        %v356 = vsel %vm265, %v333, %v348
        %v357 = vsel %vm352, %v349, %v350
        %v358 = vsel %vm354, %v356, %v357
        %v361 = vsub.f32 %v242, %v355
        %v362 = vsub.f32 %v243, %v358
        %365 = vst [vmem:[#allocation1] ss:$4 sm:$0xff] %v361
        %s366 = scalar_lea.vmem [#allocation1], 32
        %367 = vst [vmem:[%s366] ss:$4 sm:$0xff] %v362
        %v368 = vld.sshfl [vmem:[#allocation1] sm:$0xff pattern:$0x73625140]
        %v369 = vld.sshfl [vmem:[#allocation1 + $0x8] sm:$0xff pattern:$0x73625140]
        %v370 = vld.sshfl [vmem:[#allocation1 + $0x10] sm:$0xff pattern:$0x73625140]
        %v371 = vld.sshfl [vmem:[#allocation1 + $0x18] sm:$0xff pattern:$0x73625140]
        %v372 = vld.sshfl [vmem:[#allocation1 + $0x20] sm:$0xff pattern:$0x73625140]
        %v373 = vld.sshfl [vmem:[#allocation1 + $0x28] sm:$0xff pattern:$0x73625140]
        %v374 = vld.sshfl [vmem:[#allocation1 + $0x30] sm:$0xff pattern:$0x73625140]
        %v375 = vld.sshfl [vmem:[#allocation1 + $0x38] sm:$0xff pattern:$0x73625140]
        %384 = vst [vmem:[#allocation1] ss:$4 sm:$0xff] %v361
        %s385 = scalar_lea.vmem [#allocation1], 32
        %386 = vst [vmem:[%s385] ss:$4 sm:$0xff] %v362
        %v387 = vld.sshfl [vmem:[#allocation1] sm:$0xff pattern:$0x73625140]
        %v388 = vld.sshfl [vmem:[#allocation1 + $0x8] sm:$0xff pattern:$0x73625140]
        %v389 = vld.sshfl [vmem:[#allocation1 + $0x10] sm:$0xff pattern:$0x73625140]
        %v390 = vld.sshfl [vmem:[#allocation1 + $0x18] sm:$0xff pattern:$0x73625140]
        %v391 = vld.sshfl [vmem:[#allocation1 + $0x20] sm:$0xff pattern:$0x73625140]
        %v392 = vld.sshfl [vmem:[#allocation1 + $0x28] sm:$0xff pattern:$0x73625140]
        %v393 = vld.sshfl [vmem:[#allocation1 + $0x30] sm:$0xff pattern:$0x73625140]
        %v394 = vld.sshfl [vmem:[#allocation1 + $0x38] sm:$0xff pattern:$0x73625140]
        %403 = vmatpush.xpose.msra.mxu0 0.0
        %404 = vmatpush.xpose.msra.mxu0 0.0
        %405 = vmatpush.xpose.msra.mxu0 0.0
        %406 = vmatpush.xpose.msra.mxu0 0.0
        %407 = vmatpush.xpose.msra.mxu0 0.0
        %408 = vmatpush.xpose.msra.mxu0 0.0
        %409 = vmatpush.xpose.msra.mxu0 0.0
        %410 = vmatpush.xpose.msra.mxu0 0.0
        %411 = vmatpush.xpose.msra.mxu0 0.0
        %412 = vmatpush.xpose.msra.mxu0 0.0
        %413 = vmatpush.xpose.msra.mxu0 0.0
        %414 = vmatpush.xpose.msra.mxu0 0.0
        %415 = vmatpush.xpose.msra.mxu0 0.0
        %416 = vmatpush.xpose.msra.mxu0 0.0
        %417 = vmatpush.xpose.msra.mxu0 0.0
        %418 = vmatpush.xpose.msra.mxu0 %v387
        %419 = vmatmul.f32.gmra.mxu0 %v368
        %v420 = vpop.f32.mrf.mxu0
        %v421 = vadd.f32 0.0, %v420
        %422 = vdwg.mxu0
        %423 = vmatpush.xpose.msra.mxu0 0.0
        %424 = vmatpush.xpose.msra.mxu0 0.0
        %425 = vmatpush.xpose.msra.mxu0 0.0
        %426 = vmatpush.xpose.msra.mxu0 0.0
        %427 = vmatpush.xpose.msra.mxu0 0.0
        %428 = vmatpush.xpose.msra.mxu0 0.0
        %429 = vmatpush.xpose.msra.mxu0 0.0
        %430 = vmatpush.xpose.msra.mxu0 0.0
        %431 = vmatpush.xpose.msra.mxu0 0.0
        %432 = vmatpush.xpose.msra.mxu0 0.0
        %433 = vmatpush.xpose.msra.mxu0 0.0
        %434 = vmatpush.xpose.msra.mxu0 0.0
        %435 = vmatpush.xpose.msra.mxu0 0.0
        %436 = vmatpush.xpose.msra.mxu0 0.0
        %437 = vmatpush.xpose.msra.mxu0 0.0
        %438 = vmatpush.xpose.msra.mxu0 %v388
        %439 = vmatmul.f32.gmra.mxu0 %v369
        %v440 = vpop.f32.mrf.mxu0
        %v441 = vadd.f32 %v421, %v440
        %442 = vdwg.mxu0
        %443 = vmatpush.xpose.msra.mxu0 0.0
        %444 = vmatpush.xpose.msra.mxu0 0.0
        %445 = vmatpush.xpose.msra.mxu0 0.0
        %446 = vmatpush.xpose.msra.mxu0 0.0
        %447 = vmatpush.xpose.msra.mxu0 0.0
        %448 = vmatpush.xpose.msra.mxu0 0.0
        %449 = vmatpush.xpose.msra.mxu0 0.0
        %450 = vmatpush.xpose.msra.mxu0 0.0
        %451 = vmatpush.xpose.msra.mxu0 0.0
        %452 = vmatpush.xpose.msra.mxu0 0.0
        %453 = vmatpush.xpose.msra.mxu0 0.0
        %454 = vmatpush.xpose.msra.mxu0 0.0
        %455 = vmatpush.xpose.msra.mxu0 0.0
        %456 = vmatpush.xpose.msra.mxu0 0.0
        %457 = vmatpush.xpose.msra.mxu0 0.0
        %458 = vmatpush.xpose.msra.mxu0 %v389
        %459 = vmatmul.f32.gmra.mxu0 %v370
        %v460 = vpop.f32.mrf.mxu0
        %v461 = vadd.f32 %v441, %v460
        %462 = vdwg.mxu0
        %463 = vmatpush.xpose.msra.mxu0 0.0
        %464 = vmatpush.xpose.msra.mxu0 0.0
        %465 = vmatpush.xpose.msra.mxu0 0.0
        %466 = vmatpush.xpose.msra.mxu0 0.0
        %467 = vmatpush.xpose.msra.mxu0 0.0
        %468 = vmatpush.xpose.msra.mxu0 0.0
        %469 = vmatpush.xpose.msra.mxu0 0.0
        %470 = vmatpush.xpose.msra.mxu0 0.0
        %471 = vmatpush.xpose.msra.mxu0 0.0
        %472 = vmatpush.xpose.msra.mxu0 0.0
        %473 = vmatpush.xpose.msra.mxu0 0.0
        %474 = vmatpush.xpose.msra.mxu0 0.0
        %475 = vmatpush.xpose.msra.mxu0 0.0
        %476 = vmatpush.xpose.msra.mxu0 0.0
        %477 = vmatpush.xpose.msra.mxu0 0.0
        %478 = vmatpush.xpose.msra.mxu0 %v390
        %479 = vmatmul.f32.gmra.mxu0 %v371
        %v480 = vpop.f32.mrf.mxu0
        %v481 = vadd.f32 %v461, %v480
        %482 = vdwg.mxu0
        %483 = vmatpush.xpose.msra.mxu0 0.0
        %484 = vmatpush.xpose.msra.mxu0 0.0
        %485 = vmatpush.xpose.msra.mxu0 0.0
        %486 = vmatpush.xpose.msra.mxu0 0.0
        %487 = vmatpush.xpose.msra.mxu0 0.0
        %488 = vmatpush.xpose.msra.mxu0 0.0
        %489 = vmatpush.xpose.msra.mxu0 0.0
        %490 = vmatpush.xpose.msra.mxu0 0.0
        %491 = vmatpush.xpose.msra.mxu0 0.0
        %492 = vmatpush.xpose.msra.mxu0 0.0
        %493 = vmatpush.xpose.msra.mxu0 0.0
        %494 = vmatpush.xpose.msra.mxu0 0.0
        %495 = vmatpush.xpose.msra.mxu0 0.0
        %496 = vmatpush.xpose.msra.mxu0 0.0
        %497 = vmatpush.xpose.msra.mxu0 0.0
        %498 = vmatpush.xpose.msra.mxu0 %v391
        %499 = vmatmul.f32.gmra.mxu0 %v372
        %v500 = vpop.f32.mrf.mxu0
        %v501 = vadd.f32 %v481, %v500
        %502 = vdwg.mxu0
        %503 = vmatpush.xpose.msra.mxu0 0.0
        %504 = vmatpush.xpose.msra.mxu0 0.0
        %505 = vmatpush.xpose.msra.mxu0 0.0
        %506 = vmatpush.xpose.msra.mxu0 0.0
        %507 = vmatpush.xpose.msra.mxu0 0.0
        %508 = vmatpush.xpose.msra.mxu0 0.0
        %509 = vmatpush.xpose.msra.mxu0 0.0
        %510 = vmatpush.xpose.msra.mxu0 0.0
        %511 = vmatpush.xpose.msra.mxu0 0.0
        %512 = vmatpush.xpose.msra.mxu0 0.0
        %513 = vmatpush.xpose.msra.mxu0 0.0
        %514 = vmatpush.xpose.msra.mxu0 0.0
        %515 = vmatpush.xpose.msra.mxu0 0.0
        %516 = vmatpush.xpose.msra.mxu0 0.0
        %517 = vmatpush.xpose.msra.mxu0 0.0
        %518 = vmatpush.xpose.msra.mxu0 %v392
        %519 = vmatmul.f32.gmra.mxu0 %v373
        %v520 = vpop.f32.mrf.mxu0
        %v521 = vadd.f32 %v501, %v520
        %522 = vdwg.mxu0
        %523 = vmatpush.xpose.msra.mxu0 0.0
        %524 = vmatpush.xpose.msra.mxu0 0.0
        %525 = vmatpush.xpose.msra.mxu0 0.0
        %526 = vmatpush.xpose.msra.mxu0 0.0
        %527 = vmatpush.xpose.msra.mxu0 0.0
        %528 = vmatpush.xpose.msra.mxu0 0.0
        %529 = vmatpush.xpose.msra.mxu0 0.0
        %530 = vmatpush.xpose.msra.mxu0 0.0
        %531 = vmatpush.xpose.msra.mxu0 0.0
        %532 = vmatpush.xpose.msra.mxu0 0.0
        %533 = vmatpush.xpose.msra.mxu0 0.0
        %534 = vmatpush.xpose.msra.mxu0 0.0
        %535 = vmatpush.xpose.msra.mxu0 0.0
        %536 = vmatpush.xpose.msra.mxu0 0.0
        %537 = vmatpush.xpose.msra.mxu0 0.0
        %538 = vmatpush.xpose.msra.mxu0 %v393
        %539 = vmatmul.f32.gmra.mxu0 %v374
        %v540 = vpop.f32.mrf.mxu0
        %v541 = vadd.f32 %v521, %v540
        %542 = vdwg.mxu0
        %543 = vmatpush.xpose.msra.mxu0 0.0
        %544 = vmatpush.xpose.msra.mxu0 0.0
        %545 = vmatpush.xpose.msra.mxu0 0.0
        %546 = vmatpush.xpose.msra.mxu0 0.0
        %547 = vmatpush.xpose.msra.mxu0 0.0
        %548 = vmatpush.xpose.msra.mxu0 0.0
        %549 = vmatpush.xpose.msra.mxu0 0.0
        %550 = vmatpush.xpose.msra.mxu0 0.0
        %551 = vmatpush.xpose.msra.mxu0 0.0
        %552 = vmatpush.xpose.msra.mxu0 0.0
        %553 = vmatpush.xpose.msra.mxu0 0.0
        %554 = vmatpush.xpose.msra.mxu0 0.0
        %555 = vmatpush.xpose.msra.mxu0 0.0
        %556 = vmatpush.xpose.msra.mxu0 0.0
        %557 = vmatpush.xpose.msra.mxu0 0.0
        %558 = vmatpush.xpose.msra.mxu0 %v394
        %559 = vmatmul.f32.gmra.mxu0 %v375
        %v560 = vpop.f32.mrf.mxu0
        %v561 = vadd.f32 %v541, %v560
        %562 = vdwg.mxu0
        %v563 = vld [vmem:[%s222] sm:$0x3]
        %v564 = vadd.f32 %v563, %v561
        %vm565 = vcmask 9216
        %566 = vst.msk [vmem:[%s222] sm:$0x3] %vm565, %v564
        %s567 = sand.u32 %s100, 1
        %s568 = scalar_lea.sflag [#allocation4], %s567
        %s569 = sand.u32 %s100, 1
        %s570 = smul.addr %s569, 2
        %s571 = scalar_lea.vmem [#allocation7], %s570
        // Predicated region
        $region41: #{tpu_custom_call.1} parent=27 // pred_check
          %p572 = pneg %p110
        $region42: #{tpu_custom_call.1} parent=27 // pred_check_branch
          %574 = sbr.rel (%p572) target = $region44
        $region43: #{tpu_custom_call.1} parent=27 // pred_region
          %576 = vsyncadd %s568, 0
          %s577 = smul.addr %s26, 2
          %s578 = scalar_lea.hbm %s2, %s577
          %s580 = sshll.u32 %s571, 4
          %s581 = int_to_ptr.vmem [resolvable:$true] %s580
          %s582 = sshll.u32 %s578, 4
          %s583 = int_to_ptr.hbm [resolvable:$true] %s582
          %585 = dma.vmem_to_hbm [thread:$0]  %s581, 32, %s583, %s568
        $region44: #{tpu_custom_call.1} parent=27 // pred_fallthru
          _
      $region28: #{tpu_custom_call.1} parent=5 // pred_fallthru
        _
      %p586 = scmp.le.s32.totalorder 2, %s17
      // Predicated region
      $region45: #{tpu_custom_call.1} parent=5 // pred_check
        %p587 = pneg %p586
      $region46: #{tpu_custom_call.1} parent=5 // pred_check_branch
        %589 = sbr.rel (%p587) target = $region48
      $region47: #{tpu_custom_call.1} parent=5 // pred_region
        %s590 = ssub.s32 %s17, 2
        // Predicated region
        $region49: #{tpu_custom_call.1} parent=47 // pred_check
          %p591 = pneg %p116
        $region50: #{tpu_custom_call.1} parent=47 // pred_check_branch
          %593 = sbr.rel (%p591) target = $region52
        $region51: #{tpu_custom_call.1} parent=47 // pred_region
          %s594 = sand.u32 %s101, 1
          %s595 = scalar_lea.sflag [#allocation4], %s594
          %s596 = sand.u32 %s101, 1
          %s597 = smul.addr %s596, 2
          %s598 = scalar_lea.vmem [#allocation7], %s597
          %600 = dma.done %s595, 32
        $region52: #{tpu_custom_call.1} parent=47 // pred_fallthru
          _
      $region48: #{tpu_custom_call.1} parent=5 // pred_fallthru
        _
    $region6: #{tpu_custom_call.1} parent=1 // loop_footer
      %s21 = sadd.s32 1, %s17
    $region7: #{tpu_custom_call.1} parent=1 // loop_footer_branch
      %16 = sbr.rel target = $region3
    $region8: #{tpu_custom_call.1} parent=1 // loop_exit
      _
    %601 = vsyncpa [#allocation3], 1
    %s602 = scalar_lea.sflag [#allocation3], 1
    %603 = vsyncpa %s602, 1
    %604 = vsyncpa [#allocation6], 1
    %s605 = scalar_lea.sflag [#allocation6], 1
    %606 = vsyncpa %s605, 1
    %607 = vsyncpa [#allocation4], 1
    %s608 = scalar_lea.sflag [#allocation4], 1
    %609 = vsyncpa %s608, 1

</llo_original>
